<compile_context>
chip_gen: v6e
topology: v6e:2x2x1
jax: 0.10.0
libtpu: 0.0.40
codegen_flags: <defaults>
</compile_context>

<pallas_src>
import jax
import jax.numpy as jnp
from jax import lax
from jax.experimental import pallas as pl
from jax.experimental.pallas import tpu as pltpu

_LANES = 128
_SUB = 32  # accumulator sublane depth: layout-trivial for f32(8)/bf16(16)/int8-fp8(32) packing
_VMEM_LIMIT_BYTES = 32 * 1024 * 1024


def _is_dual_core_tpu():
    """True on chips with 2 TensorCores sharing HBM (v7x-class)."""
    try:
        kind = jax.devices()[0].device_kind.lower()
    except Exception:
        return False
    return ("v7" in kind) or ("7x" in kind)


def _default_block_bytes():
    # v7x streams a 2 MiB block in ~0.6us, so the ~0.35us per-grid-step overhead is
    # a large fraction of the roofline there; use bigger blocks (double-buffered
    # 2 x 8 MiB still fits comfortably under the 32 MiB scoped VMEM limit).
    return (8 if _is_dual_core_tpu() else 2) * 1024 * 1024


def _make_minmax_kernel(*, acc_dtype, tile_rows, num_steps, spp, parts, last_valid_rows):
    lo_sent = float(jnp.finfo(acc_dtype).max)   # init/mask sentinel for running MIN
    hi_sent = float(jnp.finfo(acc_dtype).min)   # init/mask sentinel for running MAX
    r_sub = tile_rows // _SUB
    ragged = last_valid_rows != tile_rows       # static: last block partially valid
    need_valid_gate = parts * spp != num_steps  # static: uneven split -> wasted steps

    def kernel(x_ref, min_ref, max_ref, acc_min, acc_max):
        p = pl.program_id(0)
        j = pl.program_id(1)
        step = p * spp + j

        @pl.when(j == 0)
        def _init():
            acc_min[...] = jnp.full(acc_min.shape, lo_sent, dtype=acc_dtype)
            acc_max[...] = jnp.full(acc_max.shape, hi_sent, dtype=acc_dtype)

        def _accum(x_min_src, x_max_src):
            # Fold the (tile_rows, 128) tile into the small (32, 128) accumulator:
            # leading-axis reduction = elementwise min/max across vregs (pure VPU).
            xm = x_min_src.reshape(r_sub, _SUB, _LANES)
            xM = x_max_src.reshape(r_sub, _SUB, _LANES)
            acc_min[...] = jnp.minimum(acc_min[...], jnp.min(xm, axis=0))
            acc_max[...] = jnp.maximum(acc_max[...], jnp.max(xM, axis=0))

        is_last_step = step == (num_steps - 1)

        if ragged:
            full_cond = jnp.logical_not(is_last_step)
            if need_valid_gate:
                full_cond = jnp.logical_and(full_cond, step < num_steps)
        else:
            full_cond = (step < num_steps) if need_valid_gate else None

        def _full_body():
            x = x_ref[...].astype(acc_dtype)
            _accum(x, x)

        if full_cond is None:
            _full_body()
        else:
            pl.when(full_cond)(_full_body)

        if ragged:
            # Only the final real step executes this (runtime-skipped elsewhere).
            @pl.when(is_last_step)
            def _ragged_body():
                x = x_ref[...].astype(acc_dtype)
                row_ids = lax.broadcasted_iota(jnp.int32, (tile_rows, _LANES), 0)
                valid = row_ids < last_valid_rows  # static valid-row count
                _accum(jnp.where(valid, x, lo_sent), jnp.where(valid, x, hi_sent))

        @pl.when(j == pl.num_programs(1) - 1)
        def _finalize():
            # Single cross-lane/cross-sublane reduction of one small accumulator.
            min_ref[0, 0] = jnp.min(acc_min[...].astype(jnp.float32))
            max_ref[0, 0] = jnp.max(acc_max[...].astype(jnp.float32))

    return kernel


def _aminmax_pallas(x, *, target_block_bytes=None, force_parts=None):
    """Global (per-tensor) aminmax over all elements of x via a Pallas kernel.

    Returns (min_val, max_val), each shape (1,) float32 (matching torch.aminmax(x)
    reshaped to (-1) in the per-tensor-symmetric branch).
    """
    flat = x.reshape(-1)  # contiguous flatten: metadata-only
    n = flat.shape[0]
    itemsize = jnp.dtype(x.dtype).itemsize
    acc_dtype = x.dtype if jnp.issubdtype(x.dtype, jnp.floating) else jnp.float32

    rows = n // _LANES
    if rows < _SUB:
        # Tiny tensor (< 4096 elements): latency-bound; reduce directly in jnp.
        f32 = flat.astype(jnp.float32)
        return jnp.min(f32).reshape(1), jnp.max(f32).reshape(1)

    if target_block_bytes is None:
        target_block_bytes = _default_block_bytes()

    max_tile_rows = max(
        _SUB, ((target_block_bytes // (itemsize * _LANES)) // _SUB) * _SUB
    )
    tile_rows = min(max_tile_rows, (rows // _SUB) * _SUB)

    num_steps = -(-rows // tile_rows)                       # cdiv: grid over-covers
    last_valid_rows = rows - (num_steps - 1) * tile_rows    # rows valid in last block

    dual_core = _is_dual_core_tpu()
    want_parts = force_parts if force_parts is not None else (2 if dual_core else 1)
    parts = want_parts if (want_parts >= 2 and num_steps >= 2) else 1
    spp = -(-num_steps // parts)                            # steps per part (ceil)

    covered = rows * _LANES

    if n % _LANES == 0:
        x2d = flat.reshape(rows, _LANES)  # pure bitcast, no HBM copy
    else:
        # TODO(synk): this prefix slice materializes a near-full-size HBM copy for
        # sizes not divisible by 128; eliminating it needs a 1-D / manual-DMA path.
        x2d = flat[: covered].reshape(rows, _LANES)

    kernel = _make_minmax_kernel(
        acc_dtype=acc_dtype, tile_rows=tile_rows, num_steps=num_steps,
        spp=spp, parts=parts, last_valid_rows=last_valid_rows)

    def in_map(p, j):
        step = p * spp + j
        if parts * spp != num_steps:
            step = jnp.minimum(step, num_steps - 1)  # wasted steps re-read last block
        return (step, 0)

    use_core_parallel = (parts >= 2) and dual_core

    def _build_and_run(dim_sem):
        return pl.pallas_call(
            kernel,
            out_shape=(
                jax.ShapeDtypeStruct((parts, 1), jnp.float32),
                jax.ShapeDtypeStruct((parts, 1), jnp.float32),
            ),
            grid_spec=pltpu.PrefetchScalarGridSpec(
                num_scalar_prefetch=0,
                grid=(parts, spp),
                in_specs=[pl.BlockSpec((tile_rows, _LANES), in_map)],
                out_specs=[
                    pl.BlockSpec((1, 1), lambda p, j: (p, 0), memory_space=pltpu.SMEM),
                    pl.BlockSpec((1, 1), lambda p, j: (p, 0), memory_space=pltpu.SMEM),
                ],
                scratch_shapes=[
                    pltpu.VMEM((_SUB, _LANES), acc_dtype),
                    pltpu.VMEM((_SUB, _LANES), acc_dtype),
                ],
            ),
            compiler_params=pltpu.CompilerParams(
                dimension_semantics=dim_sem,
                vmem_limit_bytes=_VMEM_LIMIT_BYTES,
            ),
            cost_estimate=pl.CostEstimate(
                flops=2 * covered,
                transcendentals=0,
                bytes_accessed=covered * itemsize + 8 * parts,
            ),
        )(x2d)

    if use_core_parallel:
        try:
            min_o, max_o = _build_and_run((pltpu.CORE_PARALLEL, pltpu.ARBITRARY))
        except Exception:
            # Conservative fallback if core-parallel lowering is unavailable.
            min_o, max_o = _build_and_run(("parallel", "arbitrary"))
    else:
        min_o, max_o = _build_and_run(("parallel", "arbitrary"))

    min_val = jnp.min(min_o)
    max_val = jnp.max(max_o)

    if covered < n:
        # < 128 leftover elements (n not divisible by 128): negligible jnp reduction.
        tail = flat[covered:].astype(jnp.float32)
        min_val = jnp.minimum(min_val, jnp.min(tail))
        max_val = jnp.maximum(max_val, jnp.max(tail))

    return min_val.reshape(1), max_val.reshape(1)


class MinMaxObserver:
    """JAX/Pallas port of horizon_plugin_pytorch MinMaxObserver (per_tensor_symmetric)."""

    def __init__(self, averaging_constant=0.01, quant_min=-128, quant_max=127):
        # qint8 defaults: quant_min=-128, quant_max=127
        self.averaging_constant = float(averaging_constant)
        self.quant_min = int(quant_min)
        self.quant_max = int(quant_max)
        self.eps = jnp.array([jnp.finfo(jnp.float32).eps], dtype=jnp.float32)
        self.min_val = jnp.array([], dtype=jnp.float32)
        self.max_val = jnp.array([], dtype=jnp.float32)

    def forward(self, x_orig):
        if x_orig.size == 0:
            return x_orig
        min_cur, max_cur = _aminmax_pallas(x_orig)
        if self.min_val.size == 0 or self.max_val.size == 0:
            self.min_val, self.max_val = min_cur, max_cur
        else:
            c = self.averaging_constant
            self.min_val = self.min_val + c * (min_cur - self.min_val)
            self.max_val = self.max_val + c * (max_cur - self.max_val)
        return x_orig

    __call__ = forward

    def calculate_qparams(self):
        if self.min_val.size == 0 or self.max_val.size == 0:
            # Matches reference: default scale/zero_point before any observation.
            return (jnp.array([1.0], jnp.float32), jnp.array([0], jnp.int32))
        half_range = float(self.quant_max - self.quant_min) / 2.0
        scale = jnp.clip(jnp.maximum(-self.min_val, self.max_val), 0.0, None) / half_range
        scale = jnp.maximum(scale, self.eps)
        # TODO(synk): pow_quantization (power-of-two scale) path not implemented
        # (global config defaults to False in the reference plugin).
        # Reference returns (scale, None) for the symmetric scheme after calibration.
        return scale, None


if __name__ == "__main__":
    key = jax.random.PRNGKey(0)
    k1, k2, k3, k4, k5 = jax.random.split(key, 5)

    # Observer flow (per_tensor_symmetric) on NCHW activations.
    x1 = jax.random.normal(k1, (2, 4, 32, 32), dtype=jnp.float32)
    x2 = jax.random.normal(k2, (2, 4, 32, 32), dtype=jnp.float32) * 3.0

    obs = MinMaxObserver()
    y1 = obs(x1)          # first call: initializes min_val / max_val
    y2 = obs(x2)          # second call: moving-average update
    jax.block_until_ready((obs.min_val, obs.max_val, y2))

    # Reference check (plain JAX)
    ref_min1, ref_max1 = jnp.min(x1).reshape(-1), jnp.max(x1).reshape(-1)
    ref_min2, ref_max2 = jnp.min(x2).reshape(-1), jnp.max(x2).reshape(-1)
    c = obs.averaging_constant
    ref_min = ref_min1 + c * (ref_min2 - ref_min1)
    ref_max = ref_max1 + c * (ref_max2 - ref_max1)
    assert jnp.allclose(obs.min_val, ref_min, atol=1e-6), (obs.min_val, ref_min)
    assert jnp.allclose(obs.max_val, ref_max, atol=1e-6), (obs.max_val, ref_max)
    assert jnp.array_equal(y2, x2)  # forward must return its input unchanged

    # Multi-step grid + in-kernel ragged-block masking + forced uneven 2-part split.
    x3 = jax.random.normal(k3, (2, 8, 33, 32), dtype=jnp.float32)  # 16896 = 132*128
    mn3, mx3 = _aminmax_pallas(x3, target_block_bytes=8 * 1024, force_parts=2)
    jax.block_until_ready((mn3, mx3))
    assert jnp.allclose(mn3, jnp.min(x3).reshape(-1)), (mn3, jnp.min(x3))
    assert jnp.allclose(mx3, jnp.max(x3).reshape(-1)), (mx3, jnp.max(x3))

    # bf16 native-dtype accumulation + non-128-divisible size (head/tail paths).
    x4 = jax.random.normal(k4, (4, 3, 40, 50), dtype=jnp.bfloat16)  # 24000 elems
    mn4, mx4 = _aminmax_pallas(x4)
    jax.block_until_ready((mn4, mx4))
    assert jnp.allclose(mn4, jnp.min(x4.astype(jnp.float32)).reshape(-1))
    assert jnp.allclose(mx4, jnp.max(x4.astype(jnp.float32)).reshape(-1))

    # Larger multi-block case with default block size (exercises masked last block).
    x5 = jax.random.normal(k5, (8, 64, 56, 56), dtype=jnp.float32)  # ~1.6M elems
    mn5, mx5 = _aminmax_pallas(x5)
    jax.block_until_ready((mn5, mx5))
    assert jnp.allclose(mn5, jnp.min(x5).reshape(-1))
    assert jnp.allclose(mx5, jnp.max(x5).reshape(-1))

    scale, zp = obs.calculate_qparams()
    jax.block_until_ready(scale)

    print("KERNEL_OK")
</pallas_src>

<mosaic_0001>
module attributes {stable_mosaic.version = 11 : i64} {
  func.func @kernel(%arg0: i32, %arg1: i32, %arg2: memref<64x128xf32, #tpu.memory_space<vmem>>, %arg3: memref<1x1xf32, #tpu.memory_space<smem>>, %arg4: memref<1x1xf32, #tpu.memory_space<smem>>, %arg5: memref<32x128xf32, #tpu.memory_space<vmem>>, %arg6: memref<32x128xf32, #tpu.memory_space<vmem>>) attributes {dimension_semantics = [#tpu.dimension_semantics<parallel>, #tpu.dimension_semantics<arbitrary>], iteration_bounds = array<i64: 1, 1>, scalar_prefetch = 0 : i64, scratch_operands = 2 : i64, tpu.core_type = #tpu.core_type<tc>, window_params = [{transform_indices = @transform_0, window_bounds = array<i64: 64, 128>}, {transform_indices = @transform_1, window_bounds = array<i64: 1, 1>}, {transform_indices = @transform_2, window_bounds = array<i64: 1, 1>}]} {
    %c0_i32 = arith.constant 0 : i32
    %0 = arith.cmpi eq, %arg1, %c0_i32 : i32
    %1 = arith.extui %0 : i1 to i32
    %c0_i32_0 = arith.constant 0 : i32
    %2 = arith.cmpi ne, %1, %c0_i32_0 : i32
    scf.if %2 {
      %cst_13 = arith.constant 3.40282347E+38 : f32
      %17 = vector.broadcast %cst_13 : f32 to vector<32x128xf32>
      %c0_14 = arith.constant 0 : index
      %c0_15 = arith.constant 0 : index
      %18 = vector.load %arg5[%c0_14, %c0_15] : memref<32x128xf32, #tpu.memory_space<vmem>>, vector<32x128xf32>
      tpu.vector_store %arg5[%c0_14, %c0_15], %17 {strides = array<i32>} : memref<32x128xf32, #tpu.memory_space<vmem>>, vector<32x128xf32>,
      %cst_16 = arith.constant -3.40282347E+38 : f32
      %19 = vector.broadcast %cst_16 : f32 to vector<32x128xf32>
      %c0_17 = arith.constant 0 : index
      %c0_18 = arith.constant 0 : index
      %20 = vector.load %arg6[%c0_17, %c0_18] : memref<32x128xf32, #tpu.memory_space<vmem>>, vector<32x128xf32>
      tpu.vector_store %arg6[%c0_17, %c0_18], %19 {strides = array<i32>} : memref<32x128xf32, #tpu.memory_space<vmem>>, vector<32x128xf32>,
    } else {
    }
    %c0 = arith.constant 0 : index
    %c0_1 = arith.constant 0 : index
    %3 = vector.load %arg2[%c0, %c0_1] : memref<64x128xf32, #tpu.memory_space<vmem>>, vector<64x128xf32>
    %4 = vector.shape_cast %3 : vector<64x128xf32> to vector<2x32x128xf32>
    %5 = vector.shape_cast %3 : vector<64x128xf32> to vector<2x32x128xf32>
    %c0_2 = arith.constant 0 : index
    %c0_3 = arith.constant 0 : index
    %6 = vector.load %arg5[%c0_2, %c0_3] : memref<32x128xf32, #tpu.memory_space<vmem>>, vector<32x128xf32>
    %cst = arith.constant dense<0x7F800000> : vector<32x128xf32>
    %7 = vector.multi_reduction <minimumf>, %4, %cst [0] : vector<2x32x128xf32> to vector<32x128xf32>
    %8 = arith.minimumf %6, %7 : vector<32x128xf32>
    %c0_4 = arith.constant 0 : index
    %c0_5 = arith.constant 0 : index
    %9 = vector.load %arg5[%c0_4, %c0_5] : memref<32x128xf32, #tpu.memory_space<vmem>>, vector<32x128xf32>
    tpu.vector_store %arg5[%c0_4, %c0_5], %8 {strides = array<i32>} : memref<32x128xf32, #tpu.memory_space<vmem>>, vector<32x128xf32>,
    %c0_6 = arith.constant 0 : index
    %c0_7 = arith.constant 0 : index
    %10 = vector.load %arg6[%c0_6, %c0_7] : memref<32x128xf32, #tpu.memory_space<vmem>>, vector<32x128xf32>
    %cst_8 = arith.constant dense<0xFF800000> : vector<32x128xf32>
    %11 = vector.multi_reduction <maximumf>, %5, %cst_8 [0] : vector<2x32x128xf32> to vector<32x128xf32>
    %12 = arith.maximumf %10, %11 : vector<32x128xf32>
    %c0_9 = arith.constant 0 : index
    %c0_10 = arith.constant 0 : index
    %13 = vector.load %arg6[%c0_9, %c0_10] : memref<32x128xf32, #tpu.memory_space<vmem>>, vector<32x128xf32>
    tpu.vector_store %arg6[%c0_9, %c0_10], %12 {strides = array<i32>} : memref<32x128xf32, #tpu.memory_space<vmem>>, vector<32x128xf32>,
    %c0_i32_11 = arith.constant 0 : i32
    %14 = arith.cmpi eq, %arg1, %c0_i32_11 : i32
    %15 = arith.extui %14 : i1 to i32
    %c0_i32_12 = arith.constant 0 : i32
    %16 = arith.cmpi ne, %15, %c0_i32_12 : i32
    scf.if %16 {
      %c0_13 = arith.constant 0 : index
      %c0_14 = arith.constant 0 : index
      %17 = vector.load %arg5[%c0_13, %c0_14] : memref<32x128xf32, #tpu.memory_space<vmem>>, vector<32x128xf32>
      %18 = vector.shape_cast %17 : vector<32x128xf32> to vector<1x32x128xf32>
      %cst_15 = arith.constant dense<0x7F800000> : vector<1xf32>
      %19 = vector.multi_reduction <minimumf>, %18, %cst_15 [1, 2] : vector<1x32x128xf32> to vector<1xf32>
      %20 = vector.shape_cast %19 : vector<1xf32> to vector<1x1x1xf32>
      %21 = vector.extract %20[0, 0, 0] : f32 from vector<1x1x1xf32>
      %c0_16 = arith.constant 0 : index
      %c0_17 = arith.constant 0 : index
      %22 = memref.load %arg3[%c0_16, %c0_17] : memref<1x1xf32, #tpu.memory_space<smem>>
      memref.store %21, %arg3[%c0_16, %c0_17] : memref<1x1xf32, #tpu.memory_space<smem>>
      %c0_18 = arith.constant 0 : index
      %c0_19 = arith.constant 0 : index
      %23 = vector.load %arg6[%c0_18, %c0_19] : memref<32x128xf32, #tpu.memory_space<vmem>>, vector<32x128xf32>
      %24 = vector.shape_cast %23 : vector<32x128xf32> to vector<1x32x128xf32>
      %cst_20 = arith.constant dense<0xFF800000> : vector<1xf32>
      %25 = vector.multi_reduction <maximumf>, %24, %cst_20 [1, 2] : vector<1x32x128xf32> to vector<1xf32>
      %26 = vector.shape_cast %25 : vector<1xf32> to vector<1x1x1xf32>
      %27 = vector.extract %26[0, 0, 0] : f32 from vector<1x1x1xf32>
      %c0_21 = arith.constant 0 : index
      %c0_22 = arith.constant 0 : index
      %28 = memref.load %arg4[%c0_21, %c0_22] : memref<1x1xf32, #tpu.memory_space<smem>>
      memref.store %27, %arg4[%c0_21, %c0_22] : memref<1x1xf32, #tpu.memory_space<smem>>
    } else {
    }
    return
  }
  func.func @transform_0(%arg0: i32, %arg1: i32) -> (i32, i32) {
    %c1_i32 = arith.constant 1 : i32
    %0 = arith.muli %arg0, %c1_i32 : i32
    %1 = arith.addi %0, %arg1 : i32
    %c0_i32 = arith.constant 0 : i32
    %c0_i32_0 = arith.constant 0 : i32
    return %1, %c0_i32 : i32, i32
  }
  func.func @transform_1(%arg0: i32, %arg1: i32) -> (i32, i32) {
    %c0_i32 = arith.constant 0 : i32
    %c0_i32_0 = arith.constant 0 : i32
    return %arg0, %c0_i32 : i32, i32
  }
  func.func @transform_2(%arg0: i32, %arg1: i32) -> (i32, i32) {
    %c0_i32 = arith.constant 0 : i32
    %c0_i32_0 = arith.constant 0 : i32
    return %arg0, %c0_i32 : i32, i32
  }
}

</mosaic_0001>

<llo_original>
// kernel: tpu_custom_call.1
$region0: #{tpu_custom_call.1}
  #allocation0 [shape = 'u32[]', space=smem, size = 0x4, offset = 0x4, fixed_abs, tag = 'smem constant byte address 0x4 - core index']
  #allocation1 [shape = 'u32[144,128]{1,0:T(1,128)}', space=vmem, size = 0x12000, scoped, tag = 'internal scratch']
  #allocation2 [shape = 'f32[32,128]{1,0:T(8,128)}', space=vmem, size = 0x4000, scoped, tag = 'scratch operand']
  #allocation3 [shape = 'f32[32,128]{1,0:T(8,128)}', space=vmem, size = 0x4000, scoped, tag = 'scratch operand']
  %s0 = inlined_call_operand.hbm [shape: f32[64,128], index: 0, kind: input, shape index: {}]
  %s1 = inlined_call_operand.hbm [shape: f32[1,1], index: 1, kind: output, shape index: {0}]
  %s2 = inlined_call_operand.hbm [shape: f32[1,1], index: 2, kind: output, shape index: {1}]
  %3 = xla_tuple %s1, %s2
  %s4 = sld [smem:[#allocation0]]
  $region34: #{tpu_custom_call.1} parent=0
    _
  %s6 = ssub.s32 1, %s4
  %s7 = scalar_select 0, %s6, %s4
  $region1: #{tpu_custom_call.1} parent=0
    #allocation4 [shape = 'u8[32768]{0}', space=vmem, size = 0x8000, scoped, tag = 'input window, operand 0, single buffered']
    #allocation5 [shape = 's32[1]{0}', space=sflag, size = 0x4, scoped, tag = 'scoped memory for tpu_custom_call.1']
    #allocation6 [shape = 's32[1]{0}', space=sflag, size = 0x4, scoped, tag = 'scoped memory for tpu_custom_call.1']
    #allocation7 [shape = 'u8[512]{0}', space=smem, size = 0x200, scoped, tag = 'output window, operand 0, single buffered']
    #allocation8 [shape = 'u8[512]{0}', space=smem, size = 0x200, scoped, tag = 'output window, operand 1, single buffered']
    #allocation9 [shape = 's32[1]{0}', space=sflag, size = 0x4, scoped, tag = 'scoped memory for tpu_custom_call.1']
    %8 = vsyncpa [#allocation5], 0
    %9 = vsyncpa [#allocation6], 0
    %10 = vsyncpa [#allocation9], 0
    // Predicated region
    $region2: #{tpu_custom_call.1} parent=1 // pred_check
      _
    $region3: #{tpu_custom_call.1} parent=1 // pred_check_branch
      %12 = sbr.rel (0) target = $region5
    $region4: #{tpu_custom_call.1} parent=1 // pred_region
      %s13 = sadd.s32 0, 0
      %s14 = smul.u32 8, %s13
      %s16 = ssub.s32 1024, 1024
      %17 = vsyncadd [#allocation5], %s16
      %s18 = smul.addr %s14, 128
      %s19 = scalar_lea.hbm %s0, %s18
      %s20 = sshll.u32 [#allocation4], 4
      %s21 = int_to_ptr.vmem [resolvable:$true] %s20
      %26 = dma.hbm_to_vmem [thread:$0]  %s19, 1024, %s21, [#allocation5], 128, 128, 8
    $region5: #{tpu_custom_call.1} parent=1 // pred_fallthru
      _
    // Predicated region
    $region6: #{tpu_custom_call.1} parent=1 // pred_check
      _
    $region7: #{tpu_custom_call.1} parent=1 // pred_check_branch
      %28 = sbr.rel (0) target = $region9
    $region8: #{tpu_custom_call.1} parent=1 // pred_region
      %29 = dma.done [#allocation5], 1024
    $region9: #{tpu_custom_call.1} parent=1 // pred_fallthru
      _
    %s30 = sadd.s32 0, 0
    %s31 = smul.u32 8, %s30
    %p32 = scmp.eq.s32.totalorder 0, 0
    // Predicated region
    $region10: #{tpu_custom_call.1} parent=1 // pred_check
      %p33 = pneg %p32
    $region11: #{tpu_custom_call.1} parent=1 // pred_check_branch
      %35 = sbr.rel (%p33) target = $region13
    $region12: #{tpu_custom_call.1} parent=1 // pred_region
      %36 = vst [vmem:[#allocation2] sm:$0xff] 3.4028235e+38
      %37 = vst [vmem:[#allocation2 + $0x8] sm:$0xff] 3.4028235e+38
      %38 = vst [vmem:[#allocation2 + $0x10] sm:$0xff] 3.4028235e+38
      %39 = vst [vmem:[#allocation2 + $0x18] sm:$0xff] 3.4028235e+38
      %40 = vst [vmem:[#allocation3] sm:$0xff] -3.4028235e+38
      %41 = vst [vmem:[#allocation3 + $0x8] sm:$0xff] -3.4028235e+38
      %42 = vst [vmem:[#allocation3 + $0x10] sm:$0xff] -3.4028235e+38
      %43 = vst [vmem:[#allocation3 + $0x18] sm:$0xff] -3.4028235e+38
    $region13: #{tpu_custom_call.1} parent=1 // pred_fallthru
      _
    %v44 = vld [vmem:[#allocation4] sm:$0xff]
    %v45 = vld [vmem:[#allocation4 + $0x8] sm:$0xff]
    %v46 = vld [vmem:[#allocation4 + $0x10] sm:$0xff]
    %v47 = vld [vmem:[#allocation4 + $0x18] sm:$0xff]
    %v48 = vld [vmem:[#allocation4 + $0x20] sm:$0xff]
    %v49 = vld [vmem:[#allocation4 + $0x28] sm:$0xff]
    %v50 = vld [vmem:[#allocation4 + $0x30] sm:$0xff]
    %v51 = vld [vmem:[#allocation4 + $0x38] sm:$0xff]
    %v52 = vld [vmem:[#allocation2] sm:$0xff]
    %v53 = vld [vmem:[#allocation2 + $0x8] sm:$0xff]
    %v54 = vld [vmem:[#allocation2 + $0x10] sm:$0xff]
    %v55 = vld [vmem:[#allocation2 + $0x18] sm:$0xff]
    %v56 = vmin.f32 %v44, %v48
    %v57 = vmin.f32 %v45, %v49
    %v58 = vmin.f32 %v46, %v50
    %v59 = vmin.f32 %v47, %v51
    %v60 = vmin.f32 %v52, %v56
    %v61 = vmin.f32 %v53, %v57
    %v62 = vmin.f32 %v54, %v58
    %v63 = vmin.f32 %v55, %v59
    %64 = vst [vmem:[#allocation2] sm:$0xff] %v60
    %65 = vst [vmem:[#allocation2 + $0x8] sm:$0xff] %v61
    %66 = vst [vmem:[#allocation2 + $0x10] sm:$0xff] %v62
    %67 = vst [vmem:[#allocation2 + $0x18] sm:$0xff] %v63
    %v68 = vld [vmem:[#allocation3] sm:$0xff]
    %v69 = vld [vmem:[#allocation3 + $0x8] sm:$0xff]
    %v70 = vld [vmem:[#allocation3 + $0x10] sm:$0xff]
    %v71 = vld [vmem:[#allocation3 + $0x18] sm:$0xff]
    %v72 = vmax.f32 %v44, %v48
    %v73 = vmax.f32 %v45, %v49
    %v74 = vmax.f32 %v46, %v50
    %v75 = vmax.f32 %v47, %v51
    %v76 = vmax.f32 %v68, %v72
    %v77 = vmax.f32 %v69, %v73
    %v78 = vmax.f32 %v70, %v74
    %v79 = vmax.f32 %v71, %v75
    %80 = vst [vmem:[#allocation3] sm:$0xff] %v76
    %81 = vst [vmem:[#allocation3 + $0x8] sm:$0xff] %v77
    %82 = vst [vmem:[#allocation3 + $0x10] sm:$0xff] %v78
    %83 = vst [vmem:[#allocation3 + $0x18] sm:$0xff] %v79
    // Predicated region
    $region14: #{tpu_custom_call.1} parent=1 // pred_check
      %p84 = pneg %p32
    $region15: #{tpu_custom_call.1} parent=1 // pred_check_branch
      %86 = sbr.rel (%p84) target = $region17
    $region16: #{tpu_custom_call.1} parent=1 // pred_region
      %v87 = vld [vmem:[#allocation2] sm:$0xff]
      %v88 = vld [vmem:[#allocation2 + $0x8] sm:$0xff]
      %v89 = vld [vmem:[#allocation2 + $0x10] sm:$0xff]
      %v90 = vld [vmem:[#allocation2 + $0x18] sm:$0xff]
      %v91 = vmin.f32 %v87, %v88
      %v92 = vmin.f32 %v89, %v90
      %v93 = vmin.f32 %v91, %v92
      %94 = vmin.xlane.f32.xlu0 %v93
      %v95 = vpop.xlane.xlu0 %94
      %v96 = vrot.slane %v95, 4
      %v97 = vmin.f32 %v95, %v96
      %v98 = vrot.slane %v97, 2
      %v99 = vmin.f32 %v97, %v98
      %v100 = vrot.slane %v99, 1
      %v101 = vmin.f32 %v99, %v100
      %s102 = vtos %v101
      %s103 = scalar_lea.smem [#allocation7], 0
      %104 = sst [smem:[%s103]] %s102
      %v105 = vld [vmem:[#allocation3] sm:$0xff]
      %v106 = vld [vmem:[#allocation3 + $0x8] sm:$0xff]
      %v107 = vld [vmem:[#allocation3 + $0x10] sm:$0xff]
      %v108 = vld [vmem:[#allocation3 + $0x18] sm:$0xff]
      %v109 = vmax.f32 %v105, %v106
      %v110 = vmax.f32 %v107, %v108
      %v111 = vmax.f32 %v109, %v110
      %112 = vmax.xlane.f32.xlu0 %v111
      %v113 = vpop.xlane.xlu0 %112
      %v114 = vrot.slane %v113, 4
      %v115 = vmax.f32 %v113, %v114
      %v116 = vrot.slane %v115, 2
      %v117 = vmax.f32 %v115, %v116
      %v118 = vrot.slane %v117, 1
      %v119 = vmax.f32 %v117, %v118
      %s120 = vtos %v119
      %s121 = scalar_lea.smem [#allocation8], 0
      %122 = sst [smem:[%s121]] %s120
    $region17: #{tpu_custom_call.1} parent=1 // pred_fallthru
      _
    // Predicated region
    $region18: #{tpu_custom_call.1} parent=1 // pred_check
      _
    $region19: #{tpu_custom_call.1} parent=1 // pred_check_branch
      %124 = sbr.rel (0) target = $region21
    $region20: #{tpu_custom_call.1} parent=1 // pred_region
      %s126 = ssub.s32 16, 16
      %127 = vsyncadd [#allocation6], %s126
      %130 = dma.smem_to_hbm [#allocation7], 16, %s1, [#allocation6]
    $region21: #{tpu_custom_call.1} parent=1 // pred_fallthru
      _
    // Predicated region
    $region22: #{tpu_custom_call.1} parent=1 // pred_check
      _
    $region23: #{tpu_custom_call.1} parent=1 // pred_check_branch
      %132 = sbr.rel (0) target = $region25
    $region24: #{tpu_custom_call.1} parent=1 // pred_region
      %s134 = ssub.s32 16, 16
      %135 = vsyncadd [#allocation9], %s134
      %138 = dma.smem_to_hbm [#allocation8], 16, %s2, [#allocation9]
    $region25: #{tpu_custom_call.1} parent=1 // pred_fallthru
      _
    // Predicated region
    $region26: #{tpu_custom_call.1} parent=1 // pred_check
      _
    $region27: #{tpu_custom_call.1} parent=1 // pred_check_branch
      %140 = sbr.rel (0) target = $region29
    $region28: #{tpu_custom_call.1} parent=1 // pred_region
      %141 = dma.done [#allocation6], 16
    $region29: #{tpu_custom_call.1} parent=1 // pred_fallthru
      _
    // Predicated region
    $region30: #{tpu_custom_call.1} parent=1 // pred_check
      _
    $region31: #{tpu_custom_call.1} parent=1 // pred_check_branch
      %143 = sbr.rel (0) target = $region33
    $region32: #{tpu_custom_call.1} parent=1 // pred_region
      %144 = dma.done [#allocation9], 16
    $region33: #{tpu_custom_call.1} parent=1 // pred_fallthru
      _
    %145 = sfence
    %146 = vsyncpa [#allocation5], 1
    %147 = vsyncpa [#allocation6], 1
    %148 = vsyncpa [#allocation9], 1

</llo_original>
